<compile_context>
chip_gen: v6e
topology: v6e:2x2x1
jax: 0.10.0
libtpu: 0.0.40
codegen_flags: <defaults>
</compile_context>

<pallas_src>
import math

import jax
import jax.numpy as jnp
from jax.experimental import pallas as pl
from jax.experimental.pallas import tpu as pltpu

_LANE_WIDTH = 1024   # slab width: large multiple of 128 -> unmasked vector stores
_TILE_ROWS = 512     # block rows: multiple of 8; 512*1024*4B = 2 MiB per f32 block


def _scale_kernel(scale_ref, x_ref, o_ref):
    # scale_ref: (1,) f32 in SMEM (scalar prefetch); x_ref/o_ref: (tr, 1024) VMEM tile.
    s = scale_ref[0]
    o_ref[...] = (x_ref[...].astype(jnp.float32) * s).astype(o_ref.dtype)


def scale_forward(x: jax.Array, scale: jax.Array) -> jax.Array:
    """Elementwise x * scale (learnable scalar), matching Scale.forward."""
    orig_shape = x.shape
    orig_dtype = x.dtype

    total = math.prod(orig_shape) if orig_shape else 1

    # Flatten to a lane-dense 2D slab (rows, _LANE_WIDTH), zero-padding the tail.
    padded_total = ((total + _LANE_WIDTH - 1) // _LANE_WIDTH) * _LANE_WIDTH
    pad = padded_total - total

    x_flat = x.reshape(-1)
    if pad:
        x_flat = jnp.pad(x_flat, (0, pad))
    rows = padded_total // _LANE_WIDTH
    x2d = x_flat.reshape(rows, _LANE_WIDTH)

    # Block row extent: either the full (small) row count, or a multiple of 8.
    tr = min(_TILE_ROWS, rows)
    grid = (pl.cdiv(rows, tr),)

    # Keep the parameter in f32 regardless of the input dtype (matches PyTorch,
    # which holds the parameter in f32).
    scale_f32 = jnp.asarray(scale, dtype=jnp.float32).reshape(1)

    out2d = pl.pallas_call(
        _scale_kernel,
        out_shape=jax.ShapeDtypeStruct((rows, _LANE_WIDTH), orig_dtype),
        grid_spec=pltpu.PrefetchScalarGridSpec(
            num_scalar_prefetch=1,
            grid=grid,
            in_specs=[
                pl.BlockSpec((tr, _LANE_WIDTH), lambda i, s_ref: (i, 0)),
            ],
            out_specs=pl.BlockSpec((tr, _LANE_WIDTH), lambda i, s_ref: (i, 0)),
        ),
        compiler_params=pltpu.CompilerParams(
            dimension_semantics=("parallel",),
        ),
    )(scale_f32, x2d)

    out_flat = out2d.reshape(-1)
    if pad:
        out_flat = out_flat[:total]
    return out_flat.reshape(orig_shape)


if __name__ == "__main__":
    key = jax.random.PRNGKey(0)

    # Deterministic parameter init, matching nn.Parameter(torch.FloatTensor([0.001]))
    scale = jnp.array([0.001], dtype=jnp.float32)

    # Small NCHW input consistent with module usage: batch=2, channels=4, 16x16
    x = jax.random.normal(key, (2, 4, 16, 16), dtype=jnp.float32)
    out = jax.block_until_ready(scale_forward(x, scale))
    ref = x * scale[0]
    assert out.shape == x.shape and out.dtype == x.dtype
    assert jnp.allclose(out, ref, atol=1e-6, rtol=1e-6)

    # Odd spatial size exercises the lane-padding path (H*W not a multiple of 128).
    x_odd = jax.random.normal(jax.random.PRNGKey(1), (2, 4, 7, 7), dtype=jnp.float32)
    out_odd = jax.block_until_ready(scale_forward(x_odd, scale))
    ref_odd = x_odd * scale[0]
    assert out_odd.shape == x_odd.shape
    assert jnp.allclose(out_odd, ref_odd, atol=1e-6, rtol=1e-6)

    print("KERNEL_OK")
</pallas_src>

<mosaic_0001>
module attributes {stable_mosaic.version = 11 : i64} {
  func.func @_scale_kernel(%arg0: i32, %arg1: memref<1xf32, #tpu.memory_space<smem>>, %arg2: memref<2x1024xf32, #tpu.memory_space<vmem>>, %arg3: memref<2x1024xf32, #tpu.memory_space<vmem>>) attributes {dimension_semantics = [#tpu.dimension_semantics<parallel>], iteration_bounds = array<i64: 1>, scalar_prefetch = 1 : i64, scratch_operands = 0 : i64, tpu.core_type = #tpu.core_type<tc>, window_params = [{transform_indices = @transform_0, window_bounds = array<i64: 2, 1024>}, {transform_indices = @transform_1, window_bounds = array<i64: 2, 1024>}]} {
    %c0 = arith.constant 0 : index
    %0 = memref.load %arg1[%c0] : memref<1xf32, #tpu.memory_space<smem>>
    %c0_0 = arith.constant 0 : index
    %c0_1 = arith.constant 0 : index
    %1 = vector.load %arg2[%c0_0, %c0_1] : memref<2x1024xf32, #tpu.memory_space<vmem>>, vector<2x1024xf32>
    %2 = vector.broadcast %0 : f32 to vector<2x1024xf32>
    %3 = arith.mulf %1, %2 : vector<2x1024xf32>
    %c0_2 = arith.constant 0 : index
    %c0_3 = arith.constant 0 : index
    %4 = vector.load %arg3[%c0_2, %c0_3] : memref<2x1024xf32, #tpu.memory_space<vmem>>, vector<2x1024xf32>
    tpu.vector_store %arg3[%c0_2, %c0_3], %3 {strides = array<i32>} : memref<2x1024xf32, #tpu.memory_space<vmem>>, vector<2x1024xf32>,
    return
  }
  func.func @transform_0(%arg0: i32, %arg1: memref<1xf32, #tpu.memory_space<smem>>) -> (i32, i32) {
    %c0_i32 = arith.constant 0 : i32
    %c0_i32_0 = arith.constant 0 : i32
    return %arg0, %c0_i32 : i32, i32
  }
  func.func @transform_1(%arg0: i32, %arg1: memref<1xf32, #tpu.memory_space<smem>>) -> (i32, i32) {
    %c0_i32 = arith.constant 0 : i32
    %c0_i32_0 = arith.constant 0 : i32
    return %arg0, %c0_i32 : i32, i32
  }
}

</mosaic_0001>

<llo_original>
// kernel: tpu_custom_call.1
$region0: #{tpu_custom_call.1}
  #allocation0 [shape = 'u32[]', space=smem, size = 0x4, offset = 0x4, fixed_abs, tag = 'smem constant byte address 0x4 - core index']
  #allocation1 [shape = 'u32[144,128]{1,0:T(1,128)}', space=vmem, size = 0x12000, scoped, tag = 'internal scratch']
  #allocation2 [shape = 's32[1]{0}', space=sflag, size = 0x4, scoped, tag = 'scoped memory for tpu_custom_call.1']
  #allocation3 [shape = 'f32[1]{0:T(128)S(6)}', space=smem, size = 0x200, scoped, tag = 'prefetched SMEM operand 0']
  %s0 = inlined_call_operand.<no memory space> [shape: f32[1], index: 0, kind: input, shape index: {}]
  %s1 = inlined_call_operand.hbm [shape: f32[2,1024], index: 1, kind: input, shape index: {}]
  %s2 = inlined_call_operand.hbm [shape: f32[2,1024], index: 2, kind: output, shape index: {}]
  %s3 = sld [smem:[#allocation0]]
  $region18: #{tpu_custom_call.1} parent=0
    _
  %s5 = ssub.s32 1, %s3
  %s6 = scalar_select 0, %s5, %s3
  %7 = sst [smem:[#allocation3]] %s0
  $region1: #{tpu_custom_call.1} parent=0
    #allocation4 [shape = 'u8[8192]{0}', space=vmem, size = 0x2000, scoped, tag = 'input window, operand 1, single buffered']
    #allocation5 [shape = 's32[1]{0}', space=sflag, size = 0x4, scoped, tag = 'scoped memory for tpu_custom_call.1']
    #allocation6 [shape = 's32[1]{0}', space=sflag, size = 0x4, scoped, tag = 'scoped memory for tpu_custom_call.1']
    #allocation7 [shape = 'u8[8192]{0}', space=vmem, size = 0x2000, scoped, tag = 'output window, operand 0, single buffered']
    %8 = vsyncpa [#allocation5], 0
    %9 = vsyncpa [#allocation6], 0
    // Predicated region
    $region2: #{tpu_custom_call.1} parent=1 // pred_check
      _
    $region3: #{tpu_custom_call.1} parent=1 // pred_check_branch
      %11 = sbr.rel (0) target = $region5
    $region4: #{tpu_custom_call.1} parent=1 // pred_region
      %s13 = ssub.s32 256, 256
      %14 = vsyncadd [#allocation5], %s13
      %s16 = sshll.u32 [#allocation4], 4
      %s17 = int_to_ptr.vmem [resolvable:$true] %s16
      %19 = dma.hbm_to_vmem [thread:$0]  %s1, 256, %s17, [#allocation5]
    $region5: #{tpu_custom_call.1} parent=1 // pred_fallthru
      _
    // Predicated region
    $region6: #{tpu_custom_call.1} parent=1 // pred_check
      _
    $region7: #{tpu_custom_call.1} parent=1 // pred_check_branch
      %21 = sbr.rel (0) target = $region9
    $region8: #{tpu_custom_call.1} parent=1 // pred_region
      %22 = dma.done [#allocation5], 256
    $region9: #{tpu_custom_call.1} parent=1 // pred_fallthru
      _
    %s23 = sld [smem:[#allocation3]]
    %v24 = vld [vmem:[#allocation4] sm:$0xff]
    %v25 = vld [vmem:[#allocation4 + $0x8] sm:$0xff]
    %v26 = vstv %s23
    %v27 = vmul.f32 %v24, %v26
    %v28 = vmul.f32 %v25, %v26
    %29 = vst [vmem:[#allocation7] sm:$0xff] %v27
    %30 = vst [vmem:[#allocation7 + $0x8] sm:$0xff] %v28
    // Predicated region
    $region10: #{tpu_custom_call.1} parent=1 // pred_check
      _
    $region11: #{tpu_custom_call.1} parent=1 // pred_check_branch
      %32 = sbr.rel (0) target = $region13
    $region12: #{tpu_custom_call.1} parent=1 // pred_region
      %s34 = ssub.s32 256, 256
      %35 = vsyncadd [#allocation6], %s34
      %s37 = sshll.u32 [#allocation7], 4
      %s38 = int_to_ptr.vmem [resolvable:$true] %s37
      %40 = dma.vmem_to_hbm [thread:$0]  %s38, 256, %s2, [#allocation6]
    $region13: #{tpu_custom_call.1} parent=1 // pred_fallthru
      _
    // Predicated region
    $region14: #{tpu_custom_call.1} parent=1 // pred_check
      _
    $region15: #{tpu_custom_call.1} parent=1 // pred_check_branch
      %42 = sbr.rel (0) target = $region17
    $region16: #{tpu_custom_call.1} parent=1 // pred_region
      %43 = dma.done [#allocation6], 256
    $region17: #{tpu_custom_call.1} parent=1 // pred_fallthru
      _
    %44 = vsyncpa [#allocation5], 1
    %45 = vsyncpa [#allocation6], 1

</llo_original>
